<compile_context>
chip_gen: v6e
topology: v6e:2x2x1
jax: 0.10.0
libtpu: 0.0.40
codegen_flags: <defaults>
</compile_context>

<pallas_src>
import jax
import jax.numpy as jnp
from jax import lax
from jax.experimental import pallas as pl
from jax.experimental.pallas import tpu as pltpu


def _round_up(x, m):
    return (x + m - 1) // m * m


def _pick_tile(total, cap, unit):
    """Largest multiple of `unit` that divides `total` and is <= cap.

    `total` is assumed to be a multiple of `unit` (so `unit` always works)."""
    best = unit
    t = unit
    limit = min(total, cap)
    while t <= limit:
        if total % t == 0:
            best = t
        t += unit
    return best


# ---------------------------------------------------------------------------
# Fused Pallas kernel:
#   out = sigmoid( onehot(ptim) @ W_comb  +  (emb_uid[uid] @ W_uid + b) )
# where W_comb = emb_tim @ W_tim is pre-combined at init time.
# ---------------------------------------------------------------------------
def _fused_kernel(uid_sref, ptim_ref, w_comb_ref, uid_row_ref, w_uid_ref, b_ref, o_ref):
    # uid_sref   : (1,)                 int32  SMEM   (scalar prefetch; used by index_maps)
    # ptim_ref   : (tm, 1)              int32  VMEM
    # w_comb_ref : (tim_size, tn)       bf16   VMEM   (pre-combined emb_tim @ W_tim)
    # uid_row_ref: (1, 1, uid_emb)      f32    VMEM   (only row `uid` of emb_uid)
    # w_uid_ref  : (uid_emb, tn)        bf16   VMEM
    # b_ref      : (1, tn)              f32    VMEM
    # o_ref      : (tm, tn)             out    VMEM
    del uid_sref  # row already selected via the index_map
    tm = ptim_ref.shape[0]
    tim_size = w_comb_ref.shape[0]

    # --- uid term: fold into the bias (one tiny MXU pass per tile) -----------
    uid_row = uid_row_ref[0]                                                 # (1, uid_emb)
    bias_eff = b_ref[...] + jnp.dot(uid_row.astype(w_uid_ref.dtype),
                                    w_uid_ref[...],
                                    preferred_element_type=jnp.float32)      # (1, tn)

    # --- ptim path: exact one-hot row-select of the pre-combined table -------
    t_onehot = (ptim_ref[...] ==
                lax.broadcasted_iota(jnp.int32, (tm, tim_size), 1)
                ).astype(w_comb_ref.dtype)                                   # (tm, tim_size) bf16
    logits = jnp.dot(t_onehot, w_comb_ref[...],
                     preferred_element_type=jnp.float32) + bias_eff          # (tm, tn) f32

    # --- sigmoid as a single EUP transcendental -------------------------------
    o_ref[...] = (0.5 * jnp.tanh(0.5 * logits) + 0.5).astype(o_ref.dtype)


def fused_app_pre_gtm(uid_idx, ptim_idx, w_comb, emb_uid3, w_uid, b, *, tm, tn,
                      out_dtype=jnp.float32):
    seq_pad = ptim_idx.shape[0]
    tim_size, app_pad = w_comb.shape
    uid_size, _, uid_emb = emb_uid3.shape
    grid = (seq_pad // tm, app_pad // tn)

    out_bytes = jnp.dtype(out_dtype).itemsize
    # Double-buffered footprint of every stream + headroom; covers v5e's 16 MiB default.
    vmem_est = 2 * (tm * tn * out_bytes          # output tile
                    + tm * 4                      # ptim indices
                    + tim_size * tn * 2           # W_comb (bf16)
                    + uid_emb * tn * 2            # W_uid (bf16)
                    + tn * 4                      # bias
                    + uid_emb * 4) + (2 << 20)    # uid row + headroom
    vmem_limit = int(min(max(vmem_est, 16 << 20), 64 << 20))

    return pl.pallas_call(
        _fused_kernel,
        out_shape=jax.ShapeDtypeStruct((seq_pad, app_pad), out_dtype),
        grid_spec=pltpu.PrefetchScalarGridSpec(
            num_scalar_prefetch=1,
            grid=grid,
            in_specs=[
                pl.BlockSpec((tm, 1), lambda i, j, uid: (i, 0)),              # ptim indices
                pl.BlockSpec((tim_size, tn), lambda i, j, uid: (0, j)),       # W_comb
                pl.BlockSpec((1, 1, uid_emb), lambda i, j, uid: (uid[0], 0, 0)),  # emb_uid row
                pl.BlockSpec((uid_emb, tn), lambda i, j, uid: (0, j)),        # W_uid
                pl.BlockSpec((1, tn), lambda i, j, uid: (0, j)),              # bias
            ],
            out_specs=pl.BlockSpec((tm, tn), lambda i, j, uid: (i, j)),
        ),
        compiler_params=pltpu.CompilerParams(
            dimension_semantics=("parallel", "parallel"),
            vmem_limit_bytes=vmem_limit),
    )(uid_idx, ptim_idx, w_comb, emb_uid3, w_uid, b)


# ---------------------------------------------------------------------------
# Parameter construction (deterministic, synthetic — no checkpoint loading)
# ---------------------------------------------------------------------------
def init_params(key, *, tim_size, app_size, uid_size, uid_emb_size):
    # PyTorch layout: emb_tim: (tim_size, 24)  [the original module references
    # self.emb_tim in forward; its embedding dim must be 24 per input_size];
    # emb_uid: (uid_size, uid_emb_size); dec_app: Linear(24+uid_emb, app_size), W (out, in).
    input_size = 24 + uid_emb_size
    k1, k2, k3, k4 = jax.random.split(key, 4)
    bound = 1.0 / jnp.sqrt(jnp.float32(input_size))
    return {
        "emb_tim": jax.random.normal(k1, (tim_size, 24), jnp.float32),
        "emb_uid": jax.random.normal(k2, (uid_size, uid_emb_size), jnp.float32),
        "dec_w": jax.random.uniform(k3, (app_size, input_size), jnp.float32, -bound, bound),
        "dec_b": jax.random.uniform(k4, (app_size,), jnp.float32, -bound, bound),
    }


def prepare_kernel_params(params, *, out_dtype=jnp.float32):
    """One-time prep: split/transpose the Linear weight, pre-combine emb_tim @ W_tim,
    pad lane-dense (multiple of 128 only), cast matmul operands to bf16."""
    app_size, input_size = params["dec_w"].shape
    uid_size, uid_emb = params["emb_uid"].shape
    app_pad = _round_up(app_size, 128)

    w_t = jnp.pad(params["dec_w"].T, ((0, 0), (0, app_pad - app_size)))      # (in, app_pad) f32
    w_tim = w_t[:24]                                                          # (24, app_pad)
    w_uid = w_t[24:]                                                          # (uid_emb, app_pad)
    # onehot(ptim) @ (emb_tim @ W_tim)  ==  emb_tim[ptim] @ W_tim  (exact selection).
    w_comb = (params["emb_tim"] @ w_tim).astype(jnp.bfloat16)                 # (tim_size, app_pad)

    return {
        "w_comb": w_comb,
        "emb_uid3": params["emb_uid"].reshape(uid_size, 1, uid_emb).astype(jnp.float32),
        "w_uid": w_uid.astype(jnp.bfloat16),
        "b": jnp.pad(params["dec_b"], (0, app_pad - app_size))
             .reshape(1, app_pad).astype(jnp.float32),
        "app_size": app_size,      # python int (for slicing the padded output)
        "out_dtype": out_dtype,    # jnp.bfloat16 halves the dominant HBM store stream
    }


# ---------------------------------------------------------------------------
# Forward (thin wrapper: index packing + tile selection; hot path in-kernel)
# ---------------------------------------------------------------------------
def app_pre_gtm_forward(kparams, tim, app, loc, uid, ptim):
    # Dropout: inference-mode identity.
    # TODO(synk): training-mode dropout masking (pltpu.prng_*) not implemented.
    seq = int(tim.shape[0])
    app_size = kparams["app_size"]
    app_pad = kparams["w_comb"].shape[1]

    ptim_idx = ptim.reshape(-1, 1).astype(jnp.int32)[:seq]    # (seq, 1)
    uid_idx = uid.reshape(-1).astype(jnp.int32)[:1]           # (1,)  scalar prefetch

    # Pad seq only to the 8-row sublane tile; tiles are divisors, so no further padding.
    seq_pad = _round_up(max(seq, 8), 8)
    if seq_pad != seq:
        ptim_idx = jnp.pad(ptim_idx, ((0, seq_pad - seq), (0, 0)))

    tm = _pick_tile(seq_pad, 512, 8)
    tn = _pick_tile(app_pad, 2048, 128)

    # v7x has 2 TensorCores: if the grid would be (1, 1), split a parallel axis.
    if seq_pad // tm == 1 and app_pad // tn == 1:
        if tn % 256 == 0:
            tn //= 2
        elif tm % 16 == 0:
            tm //= 2

    out = fused_app_pre_gtm(
        uid_idx, ptim_idx,
        kparams["w_comb"], kparams["emb_uid3"], kparams["w_uid"], kparams["b"],
        tm=tm, tn=tn, out_dtype=kparams["out_dtype"],
    )
    return out[:seq, :app_size]


if __name__ == "__main__":
    # Small, deterministic configuration consistent with the module.
    seq = 8
    tim_size = 24
    app_size = 32
    uid_size = 10
    uid_emb_size = 16

    key = jax.random.PRNGKey(0)
    pkey, ikey = jax.random.split(key)
    params = init_params(
        pkey, tim_size=tim_size, app_size=app_size,
        uid_size=uid_size, uid_emb_size=uid_emb_size,
    )
    kparams = prepare_kernel_params(params)

    k_tim, k_ptim, k_uid = jax.random.split(ikey, 3)
    tim = jax.random.randint(k_tim, (seq,), 0, tim_size, dtype=jnp.int32)
    ptim = jax.random.randint(k_ptim, (seq, 1), 0, tim_size, dtype=jnp.int32)
    uid = jax.random.randint(k_uid, (1,), 0, uid_size, dtype=jnp.int32)
    app = jnp.zeros((seq, app_size), jnp.float32)   # unused by forward (as in PyTorch)
    loc = jnp.zeros((seq, 1), jnp.int32)            # unused by forward (as in PyTorch)

    score = app_pre_gtm_forward(kparams, tim, app, loc, uid, ptim)
    score = jax.block_until_ready(score)

    # Sanity check against plain-JAX f32 reference (kernel uses bf16 combined
    # weights -> relaxed tolerance).
    ptim_emb = jnp.take(params["emb_tim"], ptim[:, 0], axis=0)
    uid_emb = jnp.tile(jnp.take(params["emb_uid"], uid, axis=0), (seq, 1))
    x_ref = jnp.concatenate([ptim_emb, uid_emb], axis=1)
    ref = jax.nn.sigmoid(x_ref @ params["dec_w"].T + params["dec_b"])
    assert score.shape == (seq, app_size)
    assert jnp.allclose(score.astype(jnp.float32), ref, atol=2e-2), \
        "Pallas kernel mismatch vs reference"

    print("KERNEL_OK")
</pallas_src>

<mosaic_0001>
module attributes {stable_mosaic.version = 11 : i64} {
  func.func @_fused_kernel(%arg0: i32, %arg1: i32, %arg2: memref<1xi32, #tpu.memory_space<smem>>, %arg3: memref<8x1xi32, #tpu.memory_space<vmem>>, %arg4: memref<24x128xbf16, #tpu.memory_space<vmem>>, %arg5: memref<1x1x16xf32, #tpu.memory_space<vmem>>, %arg6: memref<16x128xbf16, #tpu.memory_space<vmem>>, %arg7: memref<1x128xf32, #tpu.memory_space<vmem>>, %arg8: memref<8x128xf32, #tpu.memory_space<vmem>>) attributes {dimension_semantics = [#tpu.dimension_semantics<parallel>, #tpu.dimension_semantics<parallel>], iteration_bounds = array<i64: 1, 1>, scalar_prefetch = 1 : i64, scratch_operands = 0 : i64, tpu.core_type = #tpu.core_type<tc>, window_params = [{transform_indices = @transform_0, window_bounds = array<i64: 8, 1>}, {transform_indices = @transform_1, window_bounds = array<i64: 24, 128>}, {transform_indices = @transform_2, window_bounds = array<i64: 1, 1, 16>}, {transform_indices = @transform_3, window_bounds = array<i64: 16, 128>}, {transform_indices = @transform_4, window_bounds = array<i64: 1, 128>}, {transform_indices = @transform_5, window_bounds = array<i64: 8, 128>}]} {
    %c0 = arith.constant 0 : index
    %c0_0 = arith.constant 0 : index
    %c0_1 = arith.constant 0 : index
    %0 = vector.load %arg5[%c0, %c0_0, %c0_1] : memref<1x1x16xf32, #tpu.memory_space<vmem>>, vector<1x1x16xf32>
    %1 = vector.shape_cast %0 : vector<1x1x16xf32> to vector<1x16xf32>
    %c0_2 = arith.constant 0 : index
    %c0_3 = arith.constant 0 : index
    %2 = vector.load %arg7[%c0_2, %c0_3] : memref<1x128xf32, #tpu.memory_space<vmem>>, vector<1x128xf32>
    %3 = arith.truncf %1 : vector<1x16xf32> to vector<1x16xbf16>
    %c0_4 = arith.constant 0 : index
    %c0_5 = arith.constant 0 : index
    %4 = vector.load %arg6[%c0_4, %c0_5] : memref<16x128xbf16, #tpu.memory_space<vmem>>, vector<16x128xbf16>
    %cst = arith.constant dense<0.000000e+00> : vector<1x128xf32>
    %5 = tpu.matmul %3, %4, %cst {dimension_numbers = #tpu.dot_dimension_numbers<[1], [0], [0], [1], [0, 0, 1, 1], [], []>} : vector<1x16xbf16>, vector<16x128xbf16>, vector<1x128xf32> -> vector<1x128xf32>
    %6 = arith.addf %2, %5 : vector<1x128xf32>
    %c0_6 = arith.constant 0 : index
    %c0_7 = arith.constant 0 : index
    %7 = vector.load %arg3[%c0_6, %c0_7] : memref<8x1xi32, #tpu.memory_space<vmem>>, vector<8x1xi32>
    %8 = tpu.iota {dimensions = array<i32: 1>} : vector<8x24xi32>
    %9 = vector.broadcast %7 : vector<8x1xi32> to vector<8x24xi32>
    %10 = arith.cmpi eq, %9, %8 : vector<8x24xi32>
    %11 = arith.extui %10 : vector<8x24xi1> to vector<8x24xi32>
    %12 = arith.sitofp %11 : vector<8x24xi32> to vector<8x24xf32>
    %13 = arith.truncf %12 : vector<8x24xf32> to vector<8x24xbf16>
    %c0_8 = arith.constant 0 : index
    %c0_9 = arith.constant 0 : index
    %14 = vector.load %arg4[%c0_8, %c0_9] : memref<24x128xbf16, #tpu.memory_space<vmem>>, vector<24x128xbf16>
    %cst_10 = arith.constant dense<0.000000e+00> : vector<8x128xf32>
    %15 = tpu.matmul %13, %14, %cst_10 {dimension_numbers = #tpu.dot_dimension_numbers<[1], [0], [0], [1], [0, 0, 1, 1], [], []>} : vector<8x24xbf16>, vector<24x128xbf16>, vector<8x128xf32> -> vector<8x128xf32>
    %16 = vector.broadcast %6 : vector<1x128xf32> to vector<8x128xf32>
    %17 = arith.addf %15, %16 : vector<8x128xf32>
    %cst_11 = arith.constant 5.000000e-01 : f32
    %18 = vector.broadcast %cst_11 : f32 to vector<8x128xf32>
    %19 = arith.mulf %18, %17 : vector<8x128xf32>
    %20 = math.tanh %19 : vector<8x128xf32>
    %cst_12 = arith.constant 5.000000e-01 : f32
    %21 = vector.broadcast %cst_12 : f32 to vector<8x128xf32>
    %22 = arith.mulf %21, %20 : vector<8x128xf32>
    %cst_13 = arith.constant 5.000000e-01 : f32
    %23 = vector.broadcast %cst_13 : f32 to vector<8x128xf32>
    %24 = arith.addf %22, %23 : vector<8x128xf32>
    %c0_14 = arith.constant 0 : index
    %c0_15 = arith.constant 0 : index
    %25 = vector.load %arg8[%c0_14, %c0_15] : memref<8x128xf32, #tpu.memory_space<vmem>>, vector<8x128xf32>
    tpu.vector_store %arg8[%c0_14, %c0_15], %24 {strides = array<i32>} : memref<8x128xf32, #tpu.memory_space<vmem>>, vector<8x128xf32>,
    return
  }
  func.func @transform_0(%arg0: i32, %arg1: i32, %arg2: memref<1xi32, #tpu.memory_space<smem>>) -> (i32, i32) {
    %c0_i32 = arith.constant 0 : i32
    %c0_i32_0 = arith.constant 0 : i32
    return %arg0, %c0_i32 : i32, i32
  }
  func.func @transform_1(%arg0: i32, %arg1: i32, %arg2: memref<1xi32, #tpu.memory_space<smem>>) -> (i32, i32) {
    %c0_i32 = arith.constant 0 : i32
    %c0_i32_0 = arith.constant 0 : i32
    return %c0_i32, %arg1 : i32, i32
  }
  func.func @transform_2(%arg0: i32, %arg1: i32, %arg2: memref<1xi32, #tpu.memory_space<smem>>) -> (i32, i32, i32) {
    %c0 = arith.constant 0 : index
    %0 = memref.load %arg2[%c0] : memref<1xi32, #tpu.memory_space<smem>>
    %c0_i32 = arith.constant 0 : i32
    %c0_i32_0 = arith.constant 0 : i32
    %c0_i32_1 = arith.constant 0 : i32
    return %0, %c0_i32, %c0_i32_0 : i32, i32, i32
  }
  func.func @transform_3(%arg0: i32, %arg1: i32, %arg2: memref<1xi32, #tpu.memory_space<smem>>) -> (i32, i32) {
    %c0_i32 = arith.constant 0 : i32
    %c0_i32_0 = arith.constant 0 : i32
    return %c0_i32, %arg1 : i32, i32
  }
  func.func @transform_4(%arg0: i32, %arg1: i32, %arg2: memref<1xi32, #tpu.memory_space<smem>>) -> (i32, i32) {
    %c0_i32 = arith.constant 0 : i32
    %c0_i32_0 = arith.constant 0 : i32
    return %c0_i32, %arg1 : i32, i32
  }
  func.func @transform_5(%arg0: i32, %arg1: i32, %arg2: memref<1xi32, #tpu.memory_space<smem>>) -> (i32, i32) {
    %c0_i32 = arith.constant 0 : i32
    return %arg0, %arg1 : i32, i32
  }
}

</mosaic_0001>

<llo_original>
// kernel: tpu_custom_call.1
$region0: #{tpu_custom_call.1}
  #allocation0 [shape = 'u32[]', space=smem, size = 0x4, offset = 0x4, fixed_abs, tag = 'smem constant byte address 0x4 - core index']
  #allocation1 [shape = 'u32[144,128]{1,0:T(1,128)}', space=vmem, size = 0x12000, scoped, tag = 'internal scratch']
  #allocation2 [shape = 's32[1]{0}', space=sflag, size = 0x4, scoped, tag = 'scoped memory for tpu_custom_call.1']
  #allocation3 [shape = 's32[1]{0:T(128)S(6)}', space=smem, size = 0x200, scoped, tag = 'prefetched SMEM operand 0']
  %s0 = inlined_call_operand.<no memory space> [shape: s32[1], index: 0, kind: input, shape index: {}]
  %s1 = inlined_call_operand.vmem [shape: s32[8,1], index: 1, kind: input, shape index: {}]
  %s2 = inlined_call_operand.vmem [shape: bf16[24,128], index: 2, kind: input, shape index: {}]
  %s3 = inlined_call_operand.hbm [shape: f32[10,1,16], index: 3, kind: input, shape index: {}]
  %s4 = inlined_call_operand.hbm [shape: bf16[16,128], index: 4, kind: input, shape index: {}]
  %s5 = inlined_call_operand.vmem [shape: f32[1,128], index: 5, kind: input, shape index: {}]
  %s6 = inlined_call_operand.hbm [shape: f32[8,128], index: 6, kind: output, shape index: {}]
  %s7 = sld [smem:[#allocation0]]
  $region38: #{tpu_custom_call.1} parent=0
    _
  %s9 = ssub.s32 1, %s7
  %s10 = scalar_select 0, %s9, %s7
  %11 = sst [smem:[#allocation3]] %s0
  $region1: #{tpu_custom_call.1} parent=0
    #allocation4 [shape = 'u8[512]{0}', space=vmem, size = 0x400, scoped, tag = 'input window, operand 3, single buffered']
    #allocation5 [shape = 's32[1]{0}', space=sflag, size = 0x4, scoped, tag = 'scoped memory for tpu_custom_call.1']
    #allocation6 [shape = 's32[1]{0}', space=sflag, size = 0x4, scoped, tag = 'scoped memory for tpu_custom_call.1']
    #allocation7 [shape = 'u8[4096]{0}', space=vmem, size = 0x1000, scoped, tag = 'input window, operand 4, single buffered']
    #allocation8 [shape = 's32[1]{0}', space=sflag, size = 0x4, scoped, tag = 'scoped memory for tpu_custom_call.1']
    #allocation9 [shape = 'u8[4096]{0}', space=vmem, size = 0x1000, scoped, tag = 'output window, operand 0, single buffered']
    %12 = vsyncpa [#allocation5], 0
    %13 = vsyncpa [#allocation8], 0
    %14 = vsyncpa [#allocation6], 0
    // Predicated region
    $region2: #{tpu_custom_call.1} parent=1 // pred_check
      _
    $region3: #{tpu_custom_call.1} parent=1 // pred_check_branch
      %16 = sbr.rel (0) target = $region5
    $region4: #{tpu_custom_call.1} parent=1 // pred_region
      _
    $region5: #{tpu_custom_call.1} parent=1 // pred_fallthru
      _
    // Predicated region
    $region6: #{tpu_custom_call.1} parent=1 // pred_check
      _
    $region7: #{tpu_custom_call.1} parent=1 // pred_check_branch
      %18 = sbr.rel (0) target = $region9
    $region8: #{tpu_custom_call.1} parent=1 // pred_region
      _
    $region9: #{tpu_custom_call.1} parent=1 // pred_fallthru
      _
    // Predicated region
    $region10: #{tpu_custom_call.1} parent=1 // pred_check
      _
    $region11: #{tpu_custom_call.1} parent=1 // pred_check_branch
      %20 = sbr.rel (0) target = $region13
    $region12: #{tpu_custom_call.1} parent=1 // pred_region
      %s21 = sld [smem:[#allocation3]]
      %s23 = ssub.s32 16, 16
      %24 = vsyncadd [#allocation5], %s23
      %s25 = smul.addr %s21, 16
      %s26 = scalar_lea.hbm %s3, %s25
      %s28 = sshll.u32 [#allocation4], 4
      %s29 = int_to_ptr.vmem [resolvable:$true] %s28
      %31 = dma.hbm_to_vmem [thread:$0]  %s26, 16, %s29, [#allocation5]
    $region13: #{tpu_custom_call.1} parent=1 // pred_fallthru
      _
    // Predicated region
    $region14: #{tpu_custom_call.1} parent=1 // pred_check
      _
    $region15: #{tpu_custom_call.1} parent=1 // pred_check_branch
      %33 = sbr.rel (0) target = $region17
    $region16: #{tpu_custom_call.1} parent=1 // pred_region
      %s35 = ssub.s32 128, 128
      %36 = vsyncadd [#allocation8], %s35
      %s37 = sshll.u32 [#allocation7], 4
      %s38 = int_to_ptr.vmem [resolvable:$true] %s37
      %43 = dma.hbm_to_vmem [thread:$0]  %s4, 128, %s38, [#allocation8], 64, 64, 4
    $region17: #{tpu_custom_call.1} parent=1 // pred_fallthru
      _
    // Predicated region
    $region18: #{tpu_custom_call.1} parent=1 // pred_check
      _
    $region19: #{tpu_custom_call.1} parent=1 // pred_check_branch
      %45 = sbr.rel (0) target = $region21
    $region20: #{tpu_custom_call.1} parent=1 // pred_region
      _
    $region21: #{tpu_custom_call.1} parent=1 // pred_fallthru
      _
    // Predicated region
    $region22: #{tpu_custom_call.1} parent=1 // pred_check
      _
    $region23: #{tpu_custom_call.1} parent=1 // pred_check_branch
      %47 = sbr.rel (0) target = $region25
    $region24: #{tpu_custom_call.1} parent=1 // pred_region
      %48 = dma.done [#allocation5], 16
    $region25: #{tpu_custom_call.1} parent=1 // pred_fallthru
      _
    // Predicated region
    $region26: #{tpu_custom_call.1} parent=1 // pred_check
      _
    $region27: #{tpu_custom_call.1} parent=1 // pred_check_branch
      %50 = sbr.rel (0) target = $region29
    $region28: #{tpu_custom_call.1} parent=1 // pred_region
      %51 = dma.done [#allocation8], 128
    $region29: #{tpu_custom_call.1} parent=1 // pred_fallthru
      _
    %s52 = sld [smem:[#allocation3]]
    %v54 = vld [vmem:[#allocation4] sm:$0x1]
    %v55 = vld [vmem:[%s5] sm:$0x1]
    %v56 = vpack.c.bf16 %v54, %v54
    %v57 = vld [vmem:[#allocation7] sm:$0xf]
    %v58 = vld [vmem:[#allocation7 + $0x4] sm:$0xf]
    %v61 = vunpack.c.l.b16 %v57
    %v62 = vunpack.c.l.b16 %v58
    %v63 = vpack.c.b16 %v62, %v61
    %vm65 = vcmask 130048
    %v67 = vsel %vm65, %v56, 0
    %69 = vmatprep.subr.bf16.mxu0 0
    %70 = vmatpush1.bf16.msra.mxu0 0
    %71 = vmatprep.subr.bf16.mxu0 0
    %72 = vmatpush1.bf16.msra.mxu0 0
    %73 = vmatprep.subr.bf16.mxu0 0
    %74 = vmatpush1.bf16.msra.mxu0 0
    %75 = vmatprep.subr.bf16.mxu0 0
    %76 = vmatpush1.bf16.msra.mxu0 0
    %77 = vmatprep.subr.bf16.mxu0 0
    %78 = vmatpush1.bf16.msra.mxu0 0
    %79 = vmatprep.subr.bf16.mxu0 0
    %80 = vmatpush1.bf16.msra.mxu0 0
    %81 = vmatprep.subr.bf16.mxu0 0
    %82 = vmatpush1.bf16.msra.mxu0 0
    %83 = vmatprep.subr.bf16.mxu0 0
    %84 = vmatpush1.bf16.msra.mxu0 %v63
    %85 = vmatprep.subr.bf16.mxu0 0
    %86 = vmatpush2.bf16.msra.mxu0 0
    %87 = vmatprep.subr.bf16.mxu0 0
    %88 = vmatpush2.bf16.msra.mxu0 0
    %89 = vmatprep.subr.bf16.mxu0 0
    %90 = vmatpush2.bf16.msra.mxu0 0
    %91 = vmatprep.subr.bf16.mxu0 0
    %92 = vmatpush2.bf16.msra.mxu0 0
    %93 = vmatprep.subr.bf16.mxu0 0
    %94 = vmatpush2.bf16.msra.mxu0 0
    %95 = vmatprep.subr.bf16.mxu0 0
    %96 = vmatpush2.bf16.msra.mxu0 0
    %97 = vmatprep.subr.bf16.mxu0 0
    %98 = vmatpush2.bf16.msra.mxu0 0
    %99 = vmatprep.subr.bf16.mxu0 0
    %100 = vmatpush2.bf16.msra.mxu0 0
    %101 = vmatprep.mubr.bf16.mxu0 0
    %102 = vmatmul.mubr.bf16.gmra.mxu0 %v67
    %v103 = vpop.f32.mrf.mxu0
    %v104 = vadd.f32 0.0, %v103
    %v105 = vpop.f32.mrf.mxu0
    %v106 = vpop.f32.mrf.mxu0
    %v107 = vpop.f32.mrf.mxu0
    %108 = vdwg.mxu0
    %v109 = vadd.f32 %v55, %v104
    %v110 = vld [vmem:[%s1] sm:$0xff]
    %v111 = vlaneseq
    %v112 = vand.u32 %v111, 127
    %113 = vset.pattern.permute.xlu0 0
    %114 = vperm.xlu0 %113, %v110
    %v115 = vpop.permute.xlu0 %114
    %vm116 = vcmp.eq.s32.totalorder %v115, %v112
    %v117 = vsel %vm116, 1, 0
    %v118 = vcvt.s32.f32 %v117
    %v119 = vpack.c.bf16 %v118, %v118
    %v120 = vld [vmem:[%s2] sm:$0xf]
    %v121 = vld [vmem:[%s2 + $0x4] sm:$0xf]
    %v122 = vld [vmem:[%s2 + $0x8] sm:$0xf]
    %v124 = vlaneseq
    %v125 = vshrl.u32 %v124, 7
    %v126 = vsub.s32 0, %v125
    %v127 = vrot.slane %v109, %v126
    %v132 = vunpack.c.l.b16 %v120
    %v133 = vunpack.c.l.b16 %v121
    %v134 = vunpack.c.l.b16 %v122
    %v135 = vpack.c.b16 %v133, %v132
    %v136 = vpack.c.b16 %v134, %v134
    %vm138 = vcmask 195584
    %v140 = vsel %vm138, %v119, 0
    %vm142 = vcmask 1043456
    %v144 = vsel %vm142, %v136, 0
    %146 = vmatprep.subr.bf16.mxu0 0
    %147 = vmatpush1.bf16.msra.mxu0 0
    %148 = vmatprep.subr.bf16.mxu0 0
    %149 = vmatpush1.bf16.msra.mxu0 0
    %150 = vmatprep.subr.bf16.mxu0 0
    %151 = vmatpush1.bf16.msra.mxu0 0
    %152 = vmatprep.subr.bf16.mxu0 0
    %153 = vmatpush1.bf16.msra.mxu0 0
    %154 = vmatprep.subr.bf16.mxu0 0
    %155 = vmatpush1.bf16.msra.mxu0 0
    %156 = vmatprep.subr.bf16.mxu0 0
    %157 = vmatpush1.bf16.msra.mxu0 0
    %158 = vmatprep.subr.bf16.mxu0 0
    %159 = vmatpush1.bf16.msra.mxu0 %v144
    %160 = vmatprep.subr.bf16.mxu0 0
    %161 = vmatpush1.bf16.msra.mxu0 %v135
    %162 = vmatprep.subr.bf16.mxu0 0
    %163 = vmatpush2.bf16.msra.mxu0 0
    %164 = vmatprep.subr.bf16.mxu0 0
    %165 = vmatpush2.bf16.msra.mxu0 0
    %166 = vmatprep.subr.bf16.mxu0 0
    %167 = vmatpush2.bf16.msra.mxu0 0
    %168 = vmatprep.subr.bf16.mxu0 0
    %169 = vmatpush2.bf16.msra.mxu0 0
    %170 = vmatprep.subr.bf16.mxu0 0
    %171 = vmatpush2.bf16.msra.mxu0 0
    %172 = vmatprep.subr.bf16.mxu0 0
    %173 = vmatpush2.bf16.msra.mxu0 0
    %174 = vmatprep.subr.bf16.mxu0 0
    %175 = vmatpush2.bf16.msra.mxu0 0
    %176 = vmatprep.subr.bf16.mxu0 0
    %177 = vmatpush2.bf16.msra.mxu0 0
    %178 = vmatprep.mubr.bf16.mxu0 0
    %179 = vmatmul.mubr.bf16.gmra.mxu0 %v140
    %v180 = vpop.f32.mrf.mxu0
    %v181 = vadd.f32 %v127, %v180
    %v182 = vpop.f32.mrf.mxu0
    %v183 = vpop.f32.mrf.mxu0
    %v184 = vpop.f32.mrf.mxu0
    %185 = vdwg.mxu0
    %v186 = vmul.f32 %v181, 0.5
    %v187 = vtanh.pop %v186
    %v188 = vmul.f32 %v187, 0.5
    %v189 = vadd.f32 %v188, 0.5
    %190 = vst [vmem:[#allocation9] sm:$0xff] %v189
    // Predicated region
    $region30: #{tpu_custom_call.1} parent=1 // pred_check
      _
    $region31: #{tpu_custom_call.1} parent=1 // pred_check_branch
      %192 = sbr.rel (0) target = $region33
    $region32: #{tpu_custom_call.1} parent=1 // pred_region
      %s194 = ssub.s32 128, 128
      %195 = vsyncadd [#allocation6], %s194
      %s197 = sshll.u32 [#allocation9], 4
      %s198 = int_to_ptr.vmem [resolvable:$true] %s197
      %200 = dma.vmem_to_hbm [thread:$0]  %s198, 128, %s6, [#allocation6]
    $region33: #{tpu_custom_call.1} parent=1 // pred_fallthru
      _
    // Predicated region
    $region34: #{tpu_custom_call.1} parent=1 // pred_check
      _
    $region35: #{tpu_custom_call.1} parent=1 // pred_check_branch
      %202 = sbr.rel (0) target = $region37
    $region36: #{tpu_custom_call.1} parent=1 // pred_region
      %203 = dma.done [#allocation6], 128
    $region37: #{tpu_custom_call.1} parent=1 // pred_fallthru
      _
    %204 = vsyncpa [#allocation5], 1
    %205 = vsyncpa [#allocation8], 1
    %206 = vsyncpa [#allocation6], 1

</llo_original>
